<compile_context>
chip_gen: v7x
topology: tpu7x:2x2x1
jax: 0.10.0
libtpu: 0.0.40
codegen_flags: <defaults>
</compile_context>

<pallas_src>
import jax
import jax.numpy as jnp
from jax.experimental import pallas as pl
from jax.experimental.pallas import tpu as pltpu

IN_DIM, HID_DIM, OUT_DIM = 120, 256, 64
LANE = 128
IN_PAD = 128      # contraction dim 120 -> 128 (zero-padded)
OUT_PAD = 128     # feature dim 64 -> 128 lanes (zero-padded)
MAX_TB = 2048     # batch-tile cap; ~1 MB/input-tile, fits every VMEM generation


def _round_up(x, m):
    return (x + m - 1) // m * m


def _checkin_kernel(x_ref, w1_ref, b1_ref, w2_ref, b2_ref, w3_ref, b3_ref,
                    feat_ref, logit_ref):
    # Fused MLP tile: 3 bf16 MXU matmuls (f32 accumulation) + VPU bias/ReLU.
    x = x_ref[...]                                                   # (TB,128) bf16
    h = jnp.dot(x, w1_ref[...], preferred_element_type=jnp.float32) + b1_ref[...]
    h = jnp.maximum(h, 0.0)                                          # ReLU
    f = jnp.dot(h.astype(jnp.bfloat16), w2_ref[...],
                preferred_element_type=jnp.float32) + b2_ref[...]
    f = jnp.maximum(f, 0.0)                                          # ReLU -> feature
    feat_ref[...] = f.astype(feat_ref.dtype)                         # lane-dense store
    logits = jnp.dot(f.astype(jnp.bfloat16), w3_ref[...],
                     preferred_element_type=jnp.float32) + b3_ref[...]
    logit_ref[...] = logits.astype(logit_ref.dtype)                  # lane-dense store


def checkin_net_forward(img, msi, checkin, params):
    """Mirrors CheckinNet.forward(img, msi, checkin) -> (checkin_feat, logits)."""
    del img, msi  # unused by the PyTorch forward pass
    w1, b1, w2, b2, w3, b3 = params
    B = checkin.shape[0]
    n_class = w3.shape[1]
    out_dtype = checkin.dtype

    # ---- lane-dense padding + one-time bf16 cast of MXU operands (wrapper side) ----
    n_class_pad = _round_up(max(n_class, 1), LANE)
    w1p = jnp.zeros((IN_PAD, HID_DIM), jnp.bfloat16).at[:IN_DIM, :].set(
        w1.astype(jnp.bfloat16))
    w2p = jnp.zeros((HID_DIM, OUT_PAD), jnp.bfloat16).at[:, :OUT_DIM].set(
        w2.astype(jnp.bfloat16))
    w3p = jnp.zeros((OUT_PAD, n_class_pad), jnp.bfloat16).at[:OUT_DIM, :n_class].set(
        w3.astype(jnp.bfloat16))
    b1p = jnp.asarray(b1, jnp.float32).reshape(1, HID_DIM)
    b2p = jnp.zeros((1, OUT_PAD), jnp.float32).at[:, :OUT_DIM].set(
        jnp.asarray(b2, jnp.float32).reshape(1, OUT_DIM))
    b3p = jnp.zeros((1, n_class_pad), jnp.float32).at[:, :n_class].set(
        jnp.asarray(b3, jnp.float32).reshape(1, n_class))

    # ---- batch tiling (TB multiple of 8, capped; pad B up to a tile multiple) ----
    TB = min(MAX_TB, _round_up(B, 8))
    B_pad = _round_up(B, TB)
    n_tiles = B_pad // TB
    x = jnp.zeros((B_pad, IN_PAD), jnp.bfloat16).at[:B, :IN_DIM].set(
        checkin.astype(jnp.bfloat16))

    def resident(shape):
        # weights / biases: same block every grid step -> stay resident in VMEM
        return pl.BlockSpec(shape, lambda i: (0, 0))

    flops = 2 * B_pad * (IN_PAD * HID_DIM + HID_DIM * OUT_PAD + OUT_PAD * n_class_pad)
    bytes_accessed = (
        B_pad * IN_PAD * 2
        + (IN_PAD * HID_DIM + HID_DIM * OUT_PAD + OUT_PAD * n_class_pad) * 2
        + (HID_DIM + OUT_PAD + n_class_pad) * 4
        + B_pad * (OUT_PAD + n_class_pad) * 4
    )

    feat_pad, logits_pad = pl.pallas_call(
        _checkin_kernel,
        grid=(n_tiles,),
        in_specs=[
            pl.BlockSpec((TB, IN_PAD), lambda i: (i, 0)),
            resident((IN_PAD, HID_DIM)),
            resident((1, HID_DIM)),
            resident((HID_DIM, OUT_PAD)),
            resident((1, OUT_PAD)),
            resident((OUT_PAD, n_class_pad)),
            resident((1, n_class_pad)),
        ],
        out_specs=(
            pl.BlockSpec((TB, OUT_PAD), lambda i: (i, 0)),
            pl.BlockSpec((TB, n_class_pad), lambda i: (i, 0)),
        ),
        out_shape=(
            jax.ShapeDtypeStruct((B_pad, OUT_PAD), out_dtype),
            jax.ShapeDtypeStruct((B_pad, n_class_pad), out_dtype),
        ),
        compiler_params=pltpu.CompilerParams(
            dimension_semantics=("parallel",)),   # megacore sharding on v7x
        cost_estimate=pl.CostEstimate(
            flops=flops, transcendentals=0, bytes_accessed=bytes_accessed),
    )(x, w1p, b1p, w2p, b2p, w3p, b3p)

    # slice the zero-padded lanes / rows back off
    feat = feat_pad[:B, :OUT_DIM]
    logits = logits_pad[:B, :n_class]
    return feat, logits


def init_params(key, n_class, dtype=jnp.float32):
    """Deterministic PyTorch-style Linear init (uniform +/- 1/sqrt(fan_in))."""
    ks = jax.random.split(key, 6)

    def lin(kw, kb, fan_in, fan_out):
        bound = 1.0 / jnp.sqrt(jnp.asarray(fan_in, dtype))
        w = jax.random.uniform(kw, (fan_in, fan_out), dtype, -bound, bound)
        b = jax.random.uniform(kb, (1, fan_out), dtype, -bound, bound)
        return w, b

    w1, b1 = lin(ks[0], ks[1], IN_DIM, HID_DIM)
    w2, b2 = lin(ks[2], ks[3], HID_DIM, OUT_DIM)
    w3, b3 = lin(ks[4], ks[5], OUT_DIM, n_class)
    return (w1, b1, w2, b2, w3, b3)


def reference_forward(checkin, params):
    """Plain-JAX fp32 reference for correctness checking."""
    w1, b1, w2, b2, w3, b3 = params
    h = jnp.maximum(checkin @ w1 + b1, 0.0)
    f = jnp.maximum(h @ w2 + b2, 0.0)
    return f, f @ w3 + b3


if __name__ == "__main__":
    key = jax.random.PRNGKey(0)
    k_param, k_img, k_msi, k_chk = jax.random.split(key, 4)

    n_class = 10
    batch = 8

    params = init_params(k_param, n_class)
    img = jax.random.normal(k_img, (batch, 3, 16, 16), jnp.float32)   # unused (NCHW)
    msi = jax.random.normal(k_msi, (batch, 4, 16, 16), jnp.float32)   # unused (NCHW)
    checkin = jax.random.normal(k_chk, (batch, IN_DIM), jnp.float32)

    feat, logits = jax.jit(checkin_net_forward)(img, msi, checkin, params)
    jax.block_until_ready((feat, logits))

    ref_feat, ref_logits = reference_forward(checkin, params)
    assert feat.shape == (batch, OUT_DIM) and logits.shape == (batch, n_class)
    # bf16 MXU operands w/ f32 accumulation -> compare vs fp32 reference at a
    # tolerance that covers bf16 input rounding (~1e-3 relative per layer).
    assert jnp.allclose(feat, ref_feat, atol=3e-2, rtol=3e-2)
    assert jnp.allclose(logits, ref_logits, atol=3e-2, rtol=3e-2)

    print("KERNEL_OK")
</pallas_src>

<mosaic_0001>
module attributes {stable_mosaic.version = 11 : i64} {
  func.func @_checkin_kernel(%arg0: i32, %arg1: memref<8x128xbf16, #tpu.memory_space<vmem>>, %arg2: memref<128x256xbf16, #tpu.memory_space<vmem>>, %arg3: memref<1x256xf32, #tpu.memory_space<vmem>>, %arg4: memref<256x128xbf16, #tpu.memory_space<vmem>>, %arg5: memref<1x128xf32, #tpu.memory_space<vmem>>, %arg6: memref<128x128xbf16, #tpu.memory_space<vmem>>, %arg7: memref<1x128xf32, #tpu.memory_space<vmem>>, %arg8: memref<8x128xf32, #tpu.memory_space<vmem>>, %arg9: memref<8x128xf32, #tpu.memory_space<vmem>>) attributes {dimension_semantics = [#tpu.dimension_semantics<parallel>], iteration_bounds = array<i64: 1>, scalar_prefetch = 0 : i64, scratch_operands = 0 : i64, tpu.core_type = #tpu.core_type<tc>, window_params = [{transform_indices = @transform_0, window_bounds = array<i64: 8, 128>}, {pipeline_mode = #tpu.pipeline_mode<synchronous>, transform_indices = @transform_1, window_bounds = array<i64: 128, 256>}, {pipeline_mode = #tpu.pipeline_mode<synchronous>, transform_indices = @transform_2, window_bounds = array<i64: 1, 256>}, {pipeline_mode = #tpu.pipeline_mode<synchronous>, transform_indices = @transform_3, window_bounds = array<i64: 256, 128>}, {pipeline_mode = #tpu.pipeline_mode<synchronous>, transform_indices = @transform_4, window_bounds = array<i64: 1, 128>}, {pipeline_mode = #tpu.pipeline_mode<synchronous>, transform_indices = @transform_5, window_bounds = array<i64: 128, 128>}, {pipeline_mode = #tpu.pipeline_mode<synchronous>, transform_indices = @transform_6, window_bounds = array<i64: 1, 128>}, {transform_indices = @transform_7, window_bounds = array<i64: 8, 128>}, {transform_indices = @transform_8, window_bounds = array<i64: 8, 128>}]} {
    %c0 = arith.constant 0 : index
    %c0_0 = arith.constant 0 : index
    %0 = vector.load %arg1[%c0, %c0_0] : memref<8x128xbf16, #tpu.memory_space<vmem>>, vector<8x128xbf16>
    %c0_1 = arith.constant 0 : index
    %c0_2 = arith.constant 0 : index
    %1 = vector.load %arg2[%c0_1, %c0_2] : memref<128x256xbf16, #tpu.memory_space<vmem>>, vector<128x256xbf16>
    %cst = arith.constant dense<0.000000e+00> : vector<8x256xf32>
    %2 = tpu.matmul %0, %1, %cst {dimension_numbers = #tpu.dot_dimension_numbers<[1], [0], [0], [1], [0, 0, 1, 1], [], []>} : vector<8x128xbf16>, vector<128x256xbf16>, vector<8x256xf32> -> vector<8x256xf32>
    %c0_3 = arith.constant 0 : index
    %c0_4 = arith.constant 0 : index
    %3 = vector.load %arg3[%c0_3, %c0_4] : memref<1x256xf32, #tpu.memory_space<vmem>>, vector<1x256xf32>
    %4 = vector.broadcast %3 : vector<1x256xf32> to vector<8x256xf32>
    %5 = arith.addf %2, %4 : vector<8x256xf32>
    %cst_5 = arith.constant 0.000000e+00 : f32
    %6 = vector.broadcast %cst_5 : f32 to vector<8x256xf32>
    %7 = arith.maximumf %5, %6 : vector<8x256xf32>
    %8 = arith.truncf %7 : vector<8x256xf32> to vector<8x256xbf16>
    %c0_6 = arith.constant 0 : index
    %c0_7 = arith.constant 0 : index
    %9 = vector.load %arg4[%c0_6, %c0_7] : memref<256x128xbf16, #tpu.memory_space<vmem>>, vector<256x128xbf16>
    %cst_8 = arith.constant dense<0.000000e+00> : vector<8x128xf32>
    %10 = tpu.matmul %8, %9, %cst_8 {dimension_numbers = #tpu.dot_dimension_numbers<[1], [0], [0], [1], [0, 0, 1, 1], [], []>} : vector<8x256xbf16>, vector<256x128xbf16>, vector<8x128xf32> -> vector<8x128xf32>
    %c0_9 = arith.constant 0 : index
    %c0_10 = arith.constant 0 : index
    %11 = vector.load %arg5[%c0_9, %c0_10] : memref<1x128xf32, #tpu.memory_space<vmem>>, vector<1x128xf32>
    %12 = vector.broadcast %11 : vector<1x128xf32> to vector<8x128xf32>
    %13 = arith.addf %10, %12 : vector<8x128xf32>
    %cst_11 = arith.constant 0.000000e+00 : f32
    %14 = vector.broadcast %cst_11 : f32 to vector<8x128xf32>
    %15 = arith.maximumf %13, %14 : vector<8x128xf32>
    %c0_12 = arith.constant 0 : index
    %c0_13 = arith.constant 0 : index
    %16 = vector.load %arg8[%c0_12, %c0_13] : memref<8x128xf32, #tpu.memory_space<vmem>>, vector<8x128xf32>
    tpu.vector_store %arg8[%c0_12, %c0_13], %15 {strides = array<i32>} : memref<8x128xf32, #tpu.memory_space<vmem>>, vector<8x128xf32>,
    %17 = arith.truncf %15 : vector<8x128xf32> to vector<8x128xbf16>
    %c0_14 = arith.constant 0 : index
    %c0_15 = arith.constant 0 : index
    %18 = vector.load %arg6[%c0_14, %c0_15] : memref<128x128xbf16, #tpu.memory_space<vmem>>, vector<128x128xbf16>
    %cst_16 = arith.constant dense<0.000000e+00> : vector<8x128xf32>
    %19 = tpu.matmul %17, %18, %cst_16 {dimension_numbers = #tpu.dot_dimension_numbers<[1], [0], [0], [1], [0, 0, 1, 1], [], []>} : vector<8x128xbf16>, vector<128x128xbf16>, vector<8x128xf32> -> vector<8x128xf32>
    %c0_17 = arith.constant 0 : index
    %c0_18 = arith.constant 0 : index
    %20 = vector.load %arg7[%c0_17, %c0_18] : memref<1x128xf32, #tpu.memory_space<vmem>>, vector<1x128xf32>
    %21 = vector.broadcast %20 : vector<1x128xf32> to vector<8x128xf32>
    %22 = arith.addf %19, %21 : vector<8x128xf32>
    %c0_19 = arith.constant 0 : index
    %c0_20 = arith.constant 0 : index
    %23 = vector.load %arg9[%c0_19, %c0_20] : memref<8x128xf32, #tpu.memory_space<vmem>>, vector<8x128xf32>
    tpu.vector_store %arg9[%c0_19, %c0_20], %22 {strides = array<i32>} : memref<8x128xf32, #tpu.memory_space<vmem>>, vector<8x128xf32>,
    return
  }
  func.func @transform_0(%arg0: i32) -> (i32, i32) {
    %c0_i32 = arith.constant 0 : i32
    %c0_i32_0 = arith.constant 0 : i32
    return %arg0, %c0_i32 : i32, i32
  }
  func.func @transform_1(%arg0: i32) -> (i32, i32) {
    %c0_i32 = arith.constant 0 : i32
    %c0_i32_0 = arith.constant 0 : i32
    %c0_i32_1 = arith.constant 0 : i32
    return %c0_i32, %c0_i32_0 : i32, i32
  }
  func.func @transform_2(%arg0: i32) -> (i32, i32) {
    %c0_i32 = arith.constant 0 : i32
    %c0_i32_0 = arith.constant 0 : i32
    %c0_i32_1 = arith.constant 0 : i32
    return %c0_i32, %c0_i32_0 : i32, i32
  }
  func.func @transform_3(%arg0: i32) -> (i32, i32) {
    %c0_i32 = arith.constant 0 : i32
    %c0_i32_0 = arith.constant 0 : i32
    %c0_i32_1 = arith.constant 0 : i32
    return %c0_i32, %c0_i32_0 : i32, i32
  }
  func.func @transform_4(%arg0: i32) -> (i32, i32) {
    %c0_i32 = arith.constant 0 : i32
    %c0_i32_0 = arith.constant 0 : i32
    %c0_i32_1 = arith.constant 0 : i32
    return %c0_i32, %c0_i32_0 : i32, i32
  }
  func.func @transform_5(%arg0: i32) -> (i32, i32) {
    %c0_i32 = arith.constant 0 : i32
    %c0_i32_0 = arith.constant 0 : i32
    %c0_i32_1 = arith.constant 0 : i32
    return %c0_i32, %c0_i32_0 : i32, i32
  }
  func.func @transform_6(%arg0: i32) -> (i32, i32) {
    %c0_i32 = arith.constant 0 : i32
    %c0_i32_0 = arith.constant 0 : i32
    %c0_i32_1 = arith.constant 0 : i32
    return %c0_i32, %c0_i32_0 : i32, i32
  }
  func.func @transform_7(%arg0: i32) -> (i32, i32) {
    %c0_i32 = arith.constant 0 : i32
    %c0_i32_0 = arith.constant 0 : i32
    return %arg0, %c0_i32 : i32, i32
  }
  func.func @transform_8(%arg0: i32) -> (i32, i32) {
    %c0_i32 = arith.constant 0 : i32
    %c0_i32_0 = arith.constant 0 : i32
    return %arg0, %c0_i32 : i32, i32
  }
}

</mosaic_0001>

<llo_original>
// kernel: checkin_net_forward.1
$region0: #{checkin_net_forward.1}
  #allocation0 [shape = 'u32[]', space=smem, size = 0x4, offset = 0x4, fixed_abs, tag = 'smem constant byte address 0x4 - core index']
  #allocation1 [shape = 'u32[144,128]{1,0:T(1,128)}', space=vmem, size = 0x12000, scoped, tag = 'internal scratch']
  %s0 = inlined_call_operand.vmem [shape: bf16[8,128], index: 0, kind: input, shape index: {}]
  %s1 = inlined_call_operand.vmem [shape: bf16[128,256], index: 1, kind: input, shape index: {}]
  %s2 = inlined_call_operand.vmem [shape: f32[1,256], index: 2, kind: input, shape index: {}]
  %s3 = inlined_call_operand.vmem [shape: bf16[256,128], index: 3, kind: input, shape index: {}]
  %s4 = inlined_call_operand.vmem [shape: f32[1,128], index: 4, kind: input, shape index: {}]
  %s5 = inlined_call_operand.vmem [shape: bf16[128,128], index: 5, kind: input, shape index: {}]
  %s6 = inlined_call_operand.vmem [shape: f32[1,128], index: 6, kind: input, shape index: {}]
  %s7 = inlined_call_operand.hbm [shape: f32[8,128], index: 7, kind: output, shape index: {0}]
  %s8 = inlined_call_operand.hbm [shape: f32[8,128], index: 8, kind: output, shape index: {1}]
  %9 = xla_tuple %s7, %s8
  %s10 = sld [smem:[#allocation0]]
  $region46: #{checkin_net_forward.1} parent=0
    _
  %s12 = ssub.s32 1, %s10
  %s13 = scalar_select 0, %s12, %s10
  $region1: #{checkin_net_forward.1} parent=0
    #allocation2 [shape = 'u8[4096]{0}', space=vmem, size = 0x1000, scoped, tag = 'output window, operand 0, single buffered']
    #allocation3 [shape = 's32[1]{0}', space=sflag, size = 0x4, scoped, tag = 'scoped memory for checkin_net_forward.1']
    #allocation4 [shape = 'u8[4096]{0}', space=vmem, size = 0x1000, scoped, tag = 'output window, operand 1, single buffered']
    #allocation5 [shape = 's32[1]{0}', space=sflag, size = 0x4, scoped, tag = 'scoped memory for checkin_net_forward.1']
    %14 = vsyncpa [#allocation3], 0
    %15 = vsyncpa [#allocation5], 0
    // Predicated region
    $region2: #{checkin_net_forward.1} parent=1 // pred_check
      _
    $region3: #{checkin_net_forward.1} parent=1 // pred_check_branch
      %17 = sbr.rel (0) target = $region5
    $region4: #{checkin_net_forward.1} parent=1 // pred_region
      _
    $region5: #{checkin_net_forward.1} parent=1 // pred_fallthru
      _
    // Predicated region
    $region6: #{checkin_net_forward.1} parent=1 // pred_check
      _
    $region7: #{checkin_net_forward.1} parent=1 // pred_check_branch
      %19 = sbr.rel (0) target = $region9
    $region8: #{checkin_net_forward.1} parent=1 // pred_region
      _
    $region9: #{checkin_net_forward.1} parent=1 // pred_fallthru
      _
    // Predicated region
    $region10: #{checkin_net_forward.1} parent=1 // pred_check
      _
    $region11: #{checkin_net_forward.1} parent=1 // pred_check_branch
      %21 = sbr.rel (0) target = $region13
    $region12: #{checkin_net_forward.1} parent=1 // pred_region
      _
    $region13: #{checkin_net_forward.1} parent=1 // pred_fallthru
      _
    // Predicated region
    $region14: #{checkin_net_forward.1} parent=1 // pred_check
      _
    $region15: #{checkin_net_forward.1} parent=1 // pred_check_branch
      %23 = sbr.rel (0) target = $region17
    $region16: #{checkin_net_forward.1} parent=1 // pred_region
      _
    $region17: #{checkin_net_forward.1} parent=1 // pred_fallthru
      _
    // Predicated region
    $region18: #{checkin_net_forward.1} parent=1 // pred_check
      _
    $region19: #{checkin_net_forward.1} parent=1 // pred_check_branch
      %25 = sbr.rel (0) target = $region21
    $region20: #{checkin_net_forward.1} parent=1 // pred_region
      _
    $region21: #{checkin_net_forward.1} parent=1 // pred_fallthru
      _
    // Predicated region
    $region22: #{checkin_net_forward.1} parent=1 // pred_check
      _
    $region23: #{checkin_net_forward.1} parent=1 // pred_check_branch
      %27 = sbr.rel (0) target = $region25
    $region24: #{checkin_net_forward.1} parent=1 // pred_region
      _
    $region25: #{checkin_net_forward.1} parent=1 // pred_fallthru
      _
    // Predicated region
    $region26: #{checkin_net_forward.1} parent=1 // pred_check
      _
    $region27: #{checkin_net_forward.1} parent=1 // pred_check_branch
      %29 = sbr.rel (0) target = $region29
    $region28: #{checkin_net_forward.1} parent=1 // pred_region
      _
    $region29: #{checkin_net_forward.1} parent=1 // pred_fallthru
      _
    %v31 = vld [vmem:[%s0] sm:$0xf]
    %v32 = vld [vmem:[%s1] sm:$0xff]
    %v33 = vld [vmem:[%s1 + $0x8] sm:$0xff]
    %v34 = vld [vmem:[%s1 + $0x10] sm:$0xff]
    %v35 = vld [vmem:[%s1 + $0x18] sm:$0xff]
    %v36 = vld [vmem:[%s1 + $0x20] sm:$0xff]
    %v37 = vld [vmem:[%s1 + $0x28] sm:$0xff]
    %v38 = vld [vmem:[%s1 + $0x30] sm:$0xff]
    %v39 = vld [vmem:[%s1 + $0x38] sm:$0xff]
    %v40 = vld [vmem:[%s1 + $0x40] sm:$0xff]
    %v41 = vld [vmem:[%s1 + $0x48] sm:$0xff]
    %v42 = vld [vmem:[%s1 + $0x50] sm:$0xff]
    %v43 = vld [vmem:[%s1 + $0x58] sm:$0xff]
    %v44 = vld [vmem:[%s1 + $0x60] sm:$0xff]
    %v45 = vld [vmem:[%s1 + $0x68] sm:$0xff]
    %v46 = vld [vmem:[%s1 + $0x70] sm:$0xff]
    %v47 = vld [vmem:[%s1 + $0x78] sm:$0xff]
    %v48 = vld [vmem:[%s2] sm:$0x3]
    %v50 = vlaneseq
    %v51 = vshrl.u32 %v50, 7
    %v52 = vsub.s32 0, %v51
    %v53 = vrot.slane %v48, %v52
    %v54 = vlaneseq
    %v55 = vshrl.u32 %v54, 7
    %v56 = vsub.s32 1, %v55
    %v57 = vrot.slane %v48, %v56
    %v76 = vunpack.c.l.b16 %v32
    %v77 = vunpack.c.h.b16 %v32
    %v78 = vunpack.c.l.b16 %v33
    %v79 = vunpack.c.h.b16 %v33
    %v80 = vunpack.c.l.b16 %v34
    %v81 = vunpack.c.h.b16 %v34
    %v82 = vunpack.c.l.b16 %v35
    %v83 = vunpack.c.h.b16 %v35
    %v84 = vunpack.c.l.b16 %v36
    %v85 = vunpack.c.h.b16 %v36
    %v86 = vunpack.c.l.b16 %v37
    %v87 = vunpack.c.h.b16 %v37
    %v88 = vunpack.c.l.b16 %v38
    %v89 = vunpack.c.h.b16 %v38
    %v90 = vunpack.c.l.b16 %v39
    %v91 = vunpack.c.h.b16 %v39
    %v92 = vunpack.c.l.b16 %v40
    %v93 = vunpack.c.h.b16 %v40
    %v94 = vunpack.c.l.b16 %v41
    %v95 = vunpack.c.h.b16 %v41
    %v96 = vunpack.c.l.b16 %v42
    %v97 = vunpack.c.h.b16 %v42
    %v98 = vunpack.c.l.b16 %v43
    %v99 = vunpack.c.h.b16 %v43
    %v100 = vunpack.c.l.b16 %v44
    %v101 = vunpack.c.h.b16 %v44
    %v102 = vunpack.c.l.b16 %v45
    %v103 = vunpack.c.h.b16 %v45
    %v104 = vunpack.c.l.b16 %v46
    %v105 = vunpack.c.h.b16 %v46
    %v106 = vunpack.c.l.b16 %v47
    %v107 = vunpack.c.h.b16 %v47
    %v108 = vpack.c.b16 %v78, %v76
    %v109 = vpack.c.b16 %v79, %v77
    %v110 = vpack.c.b16 %v82, %v80
    %v111 = vpack.c.b16 %v83, %v81
    %v112 = vpack.c.b16 %v86, %v84
    %v113 = vpack.c.b16 %v87, %v85
    %v114 = vpack.c.b16 %v90, %v88
    %v115 = vpack.c.b16 %v91, %v89
    %v116 = vpack.c.b16 %v94, %v92
    %v117 = vpack.c.b16 %v95, %v93
    %v118 = vpack.c.b16 %v98, %v96
    %v119 = vpack.c.b16 %v99, %v97
    %v120 = vpack.c.b16 %v102, %v100
    %v121 = vpack.c.b16 %v103, %v101
    %v122 = vpack.c.b16 %v106, %v104
    %v123 = vpack.c.b16 %v107, %v105
    %140 = vmatprep.subr.bf16.mxu0 %v109
    %141 = vmatpush1.bf16.msra.mxu0 %v108
    %142 = vmatprep.subr.bf16.mxu0 %v111
    %143 = vmatpush1.bf16.msra.mxu0 %v110
    %144 = vmatprep.subr.bf16.mxu0 %v113
    %145 = vmatpush1.bf16.msra.mxu0 %v112
    %146 = vmatprep.subr.bf16.mxu0 %v115
    %147 = vmatpush1.bf16.msra.mxu0 %v114
    %148 = vmatprep.subr.bf16.mxu0 %v117
    %149 = vmatpush1.bf16.msra.mxu0 %v116
    %150 = vmatprep.subr.bf16.mxu0 %v119
    %151 = vmatpush1.bf16.msra.mxu0 %v118
    %152 = vmatprep.subr.bf16.mxu0 %v121
    %153 = vmatpush1.bf16.msra.mxu0 %v120
    %154 = vmatprep.subr.bf16.mxu0 %v123
    %155 = vmatpush1.bf16.msra.mxu0 %v122
    %156 = vmatprep.subr.bf16.mxu0 0
    %157 = vmatpush1.bf16.msra.mxu0 0
    %158 = vmatprep.subr.bf16.mxu0 0
    %159 = vmatpush1.bf16.msra.mxu0 0
    %160 = vmatprep.subr.bf16.mxu0 0
    %161 = vmatpush1.bf16.msra.mxu0 0
    %162 = vmatprep.subr.bf16.mxu0 0
    %163 = vmatpush1.bf16.msra.mxu0 0
    %164 = vmatprep.subr.bf16.mxu0 0
    %165 = vmatpush1.bf16.msra.mxu0 0
    %166 = vmatprep.subr.bf16.mxu0 0
    %167 = vmatpush1.bf16.msra.mxu0 0
    %168 = vmatprep.subr.bf16.mxu0 0
    %169 = vmatpush1.bf16.msra.mxu0 0
    %170 = vmatprep.subr.bf16.mxu0 0
    %171 = vmatpush1.bf16.msra.mxu0 0
    %172 = vmatprep.mubr.bf16.mxu0 0
    %173 = vmatmul.mubr.bf16.gmra.mrb[0].mxu0 %v31
    %v174 = vpop.f32.mrb[0].mxu0
    %v175 = vadd.f32 %v53, %v174
    %v176 = vpop.f32.mrb[0].mxu0
    %v177 = vadd.f32 %v57, %v176
    %v178 = vpop.f32.mrb[0].mxu0
    %v179 = vpop.f32.mrb[0].mxu0
    %180 = vdwg.mxu0
    %v181 = vmax.f32 %v175, 0.0
    %v182 = vmax.f32 %v177, 0.0
    %v183 = vpack.c.bf16 %v181, %v181
    %v184 = vpack.c.bf16 %v182, %v182
    %v185 = vld [vmem:[%s3] sm:$0xf]
    %v186 = vld [vmem:[%s3 + $0x4] sm:$0xf]
    %v187 = vld [vmem:[%s3 + $0x8] sm:$0xf]
    %v188 = vld [vmem:[%s3 + $0xc] sm:$0xf]
    %v189 = vld [vmem:[%s3 + $0x10] sm:$0xf]
    %v190 = vld [vmem:[%s3 + $0x14] sm:$0xf]
    %v191 = vld [vmem:[%s3 + $0x18] sm:$0xf]
    %v192 = vld [vmem:[%s3 + $0x1c] sm:$0xf]
    %v193 = vld [vmem:[%s3 + $0x20] sm:$0xf]
    %v194 = vld [vmem:[%s3 + $0x24] sm:$0xf]
    %v195 = vld [vmem:[%s3 + $0x28] sm:$0xf]
    %v196 = vld [vmem:[%s3 + $0x2c] sm:$0xf]
    %v197 = vld [vmem:[%s3 + $0x30] sm:$0xf]
    %v198 = vld [vmem:[%s3 + $0x34] sm:$0xf]
    %v199 = vld [vmem:[%s3 + $0x38] sm:$0xf]
    %v200 = vld [vmem:[%s3 + $0x3c] sm:$0xf]
    %v201 = vld [vmem:[%s3 + $0x40] sm:$0xf]
    %v202 = vld [vmem:[%s3 + $0x44] sm:$0xf]
    %v203 = vld [vmem:[%s3 + $0x48] sm:$0xf]
    %v204 = vld [vmem:[%s3 + $0x4c] sm:$0xf]
    %v205 = vld [vmem:[%s3 + $0x50] sm:$0xf]
    %v206 = vld [vmem:[%s3 + $0x54] sm:$0xf]
    %v207 = vld [vmem:[%s3 + $0x58] sm:$0xf]
    %v208 = vld [vmem:[%s3 + $0x5c] sm:$0xf]
    %v209 = vld [vmem:[%s3 + $0x60] sm:$0xf]
    %v210 = vld [vmem:[%s3 + $0x64] sm:$0xf]
    %v211 = vld [vmem:[%s3 + $0x68] sm:$0xf]
    %v212 = vld [vmem:[%s3 + $0x6c] sm:$0xf]
    %v213 = vld [vmem:[%s3 + $0x70] sm:$0xf]
    %v214 = vld [vmem:[%s3 + $0x74] sm:$0xf]
    %v215 = vld [vmem:[%s3 + $0x78] sm:$0xf]
    %v216 = vld [vmem:[%s3 + $0x7c] sm:$0xf]
    %v217 = vld [vmem:[%s4] sm:$0x1]
    %v219 = vlaneseq
    %v220 = vshrl.u32 %v219, 7
    %v221 = vsub.s32 0, %v220
    %v222 = vrot.slane %v217, %v221
    %v256 = vunpack.c.l.b16 %v185
    %v257 = vunpack.c.l.b16 %v186
    %v258 = vunpack.c.l.b16 %v187
    %v259 = vunpack.c.l.b16 %v188
    %v260 = vunpack.c.l.b16 %v189
    %v261 = vunpack.c.l.b16 %v190
    %v262 = vunpack.c.l.b16 %v191
    %v263 = vunpack.c.l.b16 %v192
    %v264 = vunpack.c.l.b16 %v193
    %v265 = vunpack.c.l.b16 %v194
    %v266 = vunpack.c.l.b16 %v195
    %v267 = vunpack.c.l.b16 %v196
    %v268 = vunpack.c.l.b16 %v197
    %v269 = vunpack.c.l.b16 %v198
    %v270 = vunpack.c.l.b16 %v199
    %v271 = vunpack.c.l.b16 %v200
    %v272 = vunpack.c.l.b16 %v201
    %v273 = vunpack.c.l.b16 %v202
    %v274 = vunpack.c.l.b16 %v203
    %v275 = vunpack.c.l.b16 %v204
    %v276 = vunpack.c.l.b16 %v205
    %v277 = vunpack.c.l.b16 %v206
    %v278 = vunpack.c.l.b16 %v207
    %v279 = vunpack.c.l.b16 %v208
    %v280 = vunpack.c.l.b16 %v209
    %v281 = vunpack.c.l.b16 %v210
    %v282 = vunpack.c.l.b16 %v211
    %v283 = vunpack.c.l.b16 %v212
    %v284 = vunpack.c.l.b16 %v213
    %v285 = vunpack.c.l.b16 %v214
    %v286 = vunpack.c.l.b16 %v215
    %v287 = vunpack.c.l.b16 %v216
    %v288 = vpack.c.b16 %v257, %v256
    %v289 = vpack.c.b16 %v259, %v258
    %v290 = vpack.c.b16 %v261, %v260
    %v291 = vpack.c.b16 %v263, %v262
    %v292 = vpack.c.b16 %v265, %v264
    %v293 = vpack.c.b16 %v267, %v266
    %v294 = vpack.c.b16 %v269, %v268
    %v295 = vpack.c.b16 %v271, %v270
    %v296 = vpack.c.b16 %v273, %v272
    %v297 = vpack.c.b16 %v275, %v274
    %v298 = vpack.c.b16 %v277, %v276
    %v299 = vpack.c.b16 %v279, %v278
    %v300 = vpack.c.b16 %v281, %v280
    %v301 = vpack.c.b16 %v283, %v282
    %v302 = vpack.c.b16 %v285, %v284
    %v303 = vpack.c.b16 %v287, %v286
    %320 = vmatprep.subr.bf16.mxu0 0
    %321 = vmatpush1.bf16.msra.mxu0 %v288
    %322 = vmatprep.subr.bf16.mxu0 0
    %323 = vmatpush1.bf16.msra.mxu0 %v289
    %324 = vmatprep.subr.bf16.mxu0 0
    %325 = vmatpush1.bf16.msra.mxu0 %v290
    %326 = vmatprep.subr.bf16.mxu0 0
    %327 = vmatpush1.bf16.msra.mxu0 %v291
    %328 = vmatprep.subr.bf16.mxu0 0
    %329 = vmatpush1.bf16.msra.mxu0 %v292
    %330 = vmatprep.subr.bf16.mxu0 0
    %331 = vmatpush1.bf16.msra.mxu0 %v293
    %332 = vmatprep.subr.bf16.mxu0 0
    %333 = vmatpush1.bf16.msra.mxu0 %v294
    %334 = vmatprep.subr.bf16.mxu0 0
    %335 = vmatpush1.bf16.msra.mxu0 %v295
    %336 = vmatprep.subr.bf16.mxu0 0
    %337 = vmatpush1.bf16.msra.mxu0 %v296
    %338 = vmatprep.subr.bf16.mxu0 0
    %339 = vmatpush1.bf16.msra.mxu0 %v297
    %340 = vmatprep.subr.bf16.mxu0 0
    %341 = vmatpush1.bf16.msra.mxu0 %v298
    %342 = vmatprep.subr.bf16.mxu0 0
    %343 = vmatpush1.bf16.msra.mxu0 %v299
    %344 = vmatprep.subr.bf16.mxu0 0
    %345 = vmatpush1.bf16.msra.mxu0 %v300
    %346 = vmatprep.subr.bf16.mxu0 0
    %347 = vmatpush1.bf16.msra.mxu0 %v301
    %348 = vmatprep.subr.bf16.mxu0 0
    %349 = vmatpush1.bf16.msra.mxu0 %v302
    %350 = vmatprep.subr.bf16.mxu0 0
    %351 = vmatpush1.bf16.msra.mxu0 %v303
    %352 = vmatprep.mubr.bf16.mxu0 %v184
    %353 = vmatmul.mubr.bf16.gmra.mrb[0].mxu0 %v183
    %v354 = vpop.f32.mrb[0].mxu0
    %v355 = vadd.f32 %v222, %v354
    %v356 = vpop.f32.mrb[0].mxu0
    %v357 = vpop.f32.mrb[0].mxu0
    %v358 = vpop.f32.mrb[0].mxu0
    %359 = vdwg.mxu0
    %v360 = vmax.f32 %v355, 0.0
    %361 = vst [vmem:[#allocation2] sm:$0xff] %v360
    %v362 = vpack.c.bf16 %v360, %v360
    %v363 = vld [vmem:[%s5] sm:$0xf]
    %v364 = vld [vmem:[%s5 + $0x4] sm:$0xf]
    %v365 = vld [vmem:[%s5 + $0x8] sm:$0xf]
    %v366 = vld [vmem:[%s5 + $0xc] sm:$0xf]
    %v367 = vld [vmem:[%s5 + $0x10] sm:$0xf]
    %v368 = vld [vmem:[%s5 + $0x14] sm:$0xf]
    %v369 = vld [vmem:[%s5 + $0x18] sm:$0xf]
    %v370 = vld [vmem:[%s5 + $0x1c] sm:$0xf]
    %v371 = vld [vmem:[%s5 + $0x20] sm:$0xf]
    %v372 = vld [vmem:[%s5 + $0x24] sm:$0xf]
    %v373 = vld [vmem:[%s5 + $0x28] sm:$0xf]
    %v374 = vld [vmem:[%s5 + $0x2c] sm:$0xf]
    %v375 = vld [vmem:[%s5 + $0x30] sm:$0xf]
    %v376 = vld [vmem:[%s5 + $0x34] sm:$0xf]
    %v377 = vld [vmem:[%s5 + $0x38] sm:$0xf]
    %v378 = vld [vmem:[%s5 + $0x3c] sm:$0xf]
    %v379 = vld [vmem:[%s6] sm:$0x1]
    %v381 = vlaneseq
    %v382 = vshrl.u32 %v381, 7
    %v383 = vsub.s32 0, %v382
    %v384 = vrot.slane %v379, %v383
    %v402 = vunpack.c.l.b16 %v363
    %v403 = vunpack.c.l.b16 %v364
    %v404 = vunpack.c.l.b16 %v365
    %v405 = vunpack.c.l.b16 %v366
    %v406 = vunpack.c.l.b16 %v367
    %v407 = vunpack.c.l.b16 %v368
    %v408 = vunpack.c.l.b16 %v369
    %v409 = vunpack.c.l.b16 %v370
    %v410 = vunpack.c.l.b16 %v371
    %v411 = vunpack.c.l.b16 %v372
    %v412 = vunpack.c.l.b16 %v373
    %v413 = vunpack.c.l.b16 %v374
    %v414 = vunpack.c.l.b16 %v375
    %v415 = vunpack.c.l.b16 %v376
    %v416 = vunpack.c.l.b16 %v377
    %v417 = vunpack.c.l.b16 %v378
    %v418 = vpack.c.b16 %v403, %v402
    %v419 = vpack.c.b16 %v405, %v404
    %v420 = vpack.c.b16 %v407, %v406
    %v421 = vpack.c.b16 %v409, %v408
    %v422 = vpack.c.b16 %v411, %v410
    %v423 = vpack.c.b16 %v413, %v412
    %v424 = vpack.c.b16 %v415, %v414
    %v425 = vpack.c.b16 %v417, %v416
    %434 = vmatprep.subr.bf16.mxu0 0
    %435 = vmatpush1.bf16.msra.mxu0 %v418
    %436 = vmatprep.subr.bf16.mxu0 0
    %437 = vmatpush1.bf16.msra.mxu0 %v419
    %438 = vmatprep.subr.bf16.mxu0 0
    %439 = vmatpush1.bf16.msra.mxu0 %v420
    %440 = vmatprep.subr.bf16.mxu0 0
    %441 = vmatpush1.bf16.msra.mxu0 %v421
    %442 = vmatprep.subr.bf16.mxu0 0
    %443 = vmatpush1.bf16.msra.mxu0 %v422
    %444 = vmatprep.subr.bf16.mxu0 0
    %445 = vmatpush1.bf16.msra.mxu0 %v423
    %446 = vmatprep.subr.bf16.mxu0 0
    %447 = vmatpush1.bf16.msra.mxu0 %v424
    %448 = vmatprep.subr.bf16.mxu0 0
    %449 = vmatpush1.bf16.msra.mxu0 %v425
    %450 = vmatprep.subr.bf16.mxu0 0
    %451 = vmatpush1.bf16.msra.mxu0 0
    %452 = vmatprep.subr.bf16.mxu0 0
    %453 = vmatpush1.bf16.msra.mxu0 0
    %454 = vmatprep.subr.bf16.mxu0 0
    %455 = vmatpush1.bf16.msra.mxu0 0
    %456 = vmatprep.subr.bf16.mxu0 0
    %457 = vmatpush1.bf16.msra.mxu0 0
    %458 = vmatprep.subr.bf16.mxu0 0
    %459 = vmatpush1.bf16.msra.mxu0 0
    %460 = vmatprep.subr.bf16.mxu0 0
    %461 = vmatpush1.bf16.msra.mxu0 0
    %462 = vmatprep.subr.bf16.mxu0 0
    %463 = vmatpush1.bf16.msra.mxu0 0
    %464 = vmatprep.subr.bf16.mxu0 0
    %465 = vmatpush1.bf16.msra.mxu0 0
    %466 = vmatprep.mubr.bf16.mxu0 0
    %467 = vmatmul.mubr.bf16.gmra.mrb[0].mxu0 %v362
    %v468 = vpop.f32.mrb[0].mxu0
    %v469 = vadd.f32 %v384, %v468
    %v470 = vpop.f32.mrb[0].mxu0
    %v471 = vpop.f32.mrb[0].mxu0
    %v472 = vpop.f32.mrb[0].mxu0
    %473 = vdwg.mxu0
    %474 = vst [vmem:[#allocation4] sm:$0xff] %v469
    // Predicated region
    $region30: #{checkin_net_forward.1} parent=1 // pred_check
      _
    $region31: #{checkin_net_forward.1} parent=1 // pred_check_branch
      %476 = sbr.rel (0) target = $region33
    $region32: #{checkin_net_forward.1} parent=1 // pred_region
      %s478 = ssub.s32 128, 128
      %479 = vsyncadd [#allocation3], %s478
      %s481 = sshll.u32 [#allocation2], 4
      %s482 = int_to_ptr.vmem [resolvable:$true] %s481
      %484 = dma.vmem_to_hbm [thread:$0]  %s482, 128, %s7, [#allocation3]
    $region33: #{checkin_net_forward.1} parent=1 // pred_fallthru
      _
    // Predicated region
    $region34: #{checkin_net_forward.1} parent=1 // pred_check
      _
    $region35: #{checkin_net_forward.1} parent=1 // pred_check_branch
      %486 = sbr.rel (0) target = $region37
    $region36: #{checkin_net_forward.1} parent=1 // pred_region
      %s488 = ssub.s32 128, 128
      %489 = vsyncadd [#allocation5], %s488
      %s491 = sshll.u32 [#allocation4], 4
      %s492 = int_to_ptr.vmem [resolvable:$true] %s491
      %494 = dma.vmem_to_hbm [thread:$0]  %s492, 128, %s8, [#allocation5]
    $region37: #{checkin_net_forward.1} parent=1 // pred_fallthru
      _
    // Predicated region
    $region38: #{checkin_net_forward.1} parent=1 // pred_check
      _
    $region39: #{checkin_net_forward.1} parent=1 // pred_check_branch
      %496 = sbr.rel (0) target = $region41
    $region40: #{checkin_net_forward.1} parent=1 // pred_region
      %497 = dma.done [#allocation3], 128
    $region41: #{checkin_net_forward.1} parent=1 // pred_fallthru
      _
    // Predicated region
    $region42: #{checkin_net_forward.1} parent=1 // pred_check
      _
    $region43: #{checkin_net_forward.1} parent=1 // pred_check_branch
      %499 = sbr.rel (0) target = $region45
    $region44: #{checkin_net_forward.1} parent=1 // pred_region
      %500 = dma.done [#allocation5], 128
    $region45: #{checkin_net_forward.1} parent=1 // pred_fallthru
      _
    %501 = vsyncpa [#allocation3], 1
    %502 = vsyncpa [#allocation5], 1

</llo_original>
